<compile_context>
chip_gen: v7x
topology: tpu7x:2x2x1
jax: 0.10.0
libtpu: 0.0.40
codegen_flags: <defaults>
</compile_context>

<pallas_src>
import math
import functools

import jax
import jax.numpy as jnp
from jax import lax
from jax.experimental import pallas as pl
from jax.experimental.pallas import tpu as pltpu


# ---------------------------------------------------------------------------
# Kernels
# ---------------------------------------------------------------------------
def _embed_block_kernel(ids_ref, lut_ref, o_ref, *, scale, tokens_per_block):
    """Gather `tokens_per_block` LUT rows into one output block, then scale.

    ids_ref : SMEM (N_pad,) int32   -- scalar-prefetched token ids
    lut_ref : VMEM (V, D)           -- whole table, resident (constant index)
    o_ref   : VMEM (TB, D)
    """
    base = pl.program_id(0) * tokens_per_block

    def body(j, carry):
        tok = ids_ref[base + j]
        o_ref[pl.ds(j, 1), :] = lut_ref[pl.ds(tok, 1), :]
        return carry

    lax.fori_loop(0, tokens_per_block, body, 0,
                  unroll=(tokens_per_block <= 16))

    # One vectorized multiply over the whole block (cheaper than per-row).
    o_ref[...] = (o_ref[...] * scale).astype(o_ref.dtype)


def _embed_row_kernel(ids_ref, row_ref, o_ref, *, scale):
    """Large-vocab fallback: one BlockSpec-gathered LUT row -> one out row."""
    del ids_ref  # only consumed by the index_maps
    o_ref[...] = (row_ref[...] * scale).astype(o_ref.dtype)


# ---------------------------------------------------------------------------
# Wrapper
# ---------------------------------------------------------------------------
def embeddings_forward(token_ids, lut, *, d_model=None, force_row_gather=False):
    """Pallas equivalent of Embeddings.forward: lut[token_ids] * sqrt(d_model)."""
    if d_model is None:
        d_model = lut.shape[-1]
    scale = math.sqrt(float(d_model))

    V, D = lut.shape
    orig_shape = token_ids.shape
    ids = token_ids.reshape(-1).astype(jnp.int32)
    N = int(ids.shape[0])

    lut_bytes = V * D * lut.dtype.itemsize
    use_resident = (not force_row_gather) and lut_bytes <= 24 * 1024 * 1024

    if use_resident:
        # Token-block size: multiple of 8 (sublane-aligned output blocks),
        # large enough to amortize the ~0.35 us/step grid overhead.
        TB = 8 if N <= 64 else 128
        n_blocks = pl.cdiv(N, TB)
        N_pad = n_blocks * TB
        ids_pad = jnp.pad(ids, (0, N_pad - N))  # padded ids gather row 0, sliced off below

        kernel = functools.partial(_embed_block_kernel, scale=scale,
                                   tokens_per_block=TB)
        # Explicit VMEM budget: resident LUT + double-buffered output block + slack.
        vmem_limit = int(min(48 * 1024 * 1024,
                             lut_bytes + 4 * TB * D * lut.dtype.itemsize + (4 << 20)))

        out = pl.pallas_call(
            kernel,
            out_shape=jax.ShapeDtypeStruct((N_pad, D), lut.dtype),
            grid_spec=pltpu.PrefetchScalarGridSpec(
                num_scalar_prefetch=1,
                grid=(n_blocks,),
                in_specs=[
                    # Whole LUT, constant block index -> fetched once, stays
                    # resident in VMEM across all grid steps.
                    pl.BlockSpec((V, D), lambda i, ids_sref: (0, 0)),
                ],
                out_specs=pl.BlockSpec((TB, D), lambda i, ids_sref: (i, 0)),
            ),
            compiler_params=pltpu.CompilerParams(
                dimension_semantics=("parallel",),   # independent token blocks
                vmem_limit_bytes=vmem_limit),
        )(ids_pad, lut)
    else:
        # Canonical per-token BlockSpec gather for tables too big for VMEM.
        N_pad = N
        kernel = functools.partial(_embed_row_kernel, scale=scale)
        out = pl.pallas_call(
            kernel,
            out_shape=jax.ShapeDtypeStruct((N_pad, D), lut.dtype),
            grid_spec=pltpu.PrefetchScalarGridSpec(
                num_scalar_prefetch=1,
                grid=(N_pad,),
                in_specs=[
                    pl.BlockSpec((1, D), lambda i, ids_sref: (ids_sref[i], 0)),
                ],
                out_specs=pl.BlockSpec((1, D), lambda i, ids_sref: (i, 0)),
            ),
            compiler_params=pltpu.CompilerParams(
                dimension_semantics=("arbitrary",)),
        )(ids, lut)

    return out[:N].reshape(*orig_shape, D)


# ---------------------------------------------------------------------------
# Main
# ---------------------------------------------------------------------------
if __name__ == "__main__":
    key = jax.random.PRNGKey(0)
    B, S, D, V = 2, 8, 32, 64      # batch, seq, d_model, vocab
    k_ids, k_lut = jax.random.split(key)

    token_ids = jax.random.randint(k_ids, (B, S), 0, V, dtype=jnp.int32)
    lut = jax.random.normal(k_lut, (V, D), dtype=jnp.float32)

    ref = lut[token_ids] * math.sqrt(D)

    # Default (VMEM-resident LUT) path.
    y = embeddings_forward(token_ids, lut)
    y = jax.block_until_ready(y)
    assert y.shape == (B, S, D)
    assert jnp.allclose(y, ref, atol=1e-5, rtol=1e-5), "resident-LUT path mismatch"

    # Large-vocab row-gather path (forced, to exercise both code paths).
    y2 = embeddings_forward(token_ids, lut, force_row_gather=True)
    y2 = jax.block_until_ready(y2)
    assert jnp.allclose(y2, ref, atol=1e-5, rtol=1e-5), "row-gather path mismatch"

    print("KERNEL_OK")
</pallas_src>

<mosaic_0001>
module attributes {stable_mosaic.version = 11 : i64} {
  func.func @_embed_block_kernel(%arg0: i32, %arg1: memref<16xi32, #tpu.memory_space<smem>>, %arg2: memref<64x32xf32, #tpu.memory_space<vmem>>, %arg3: memref<8x32xf32, #tpu.memory_space<vmem>>) attributes {dimension_semantics = [#tpu.dimension_semantics<parallel>], iteration_bounds = array<i64: 2>, scalar_prefetch = 1 : i64, scratch_operands = 0 : i64, tpu.core_type = #tpu.core_type<tc>, window_params = [{pipeline_mode = #tpu.pipeline_mode<synchronous>, transform_indices = @transform_0, window_bounds = array<i64: 64, 32>}, {transform_indices = @transform_1, window_bounds = array<i64: 8, 32>}]} {
    %c8_i32 = arith.constant 8 : i32
    %0 = arith.muli %arg0, %c8_i32 : i32
    %c0_i32 = arith.constant 0 : i32
    %1 = arith.addi %0, %c0_i32 : i32
    %2 = arith.index_cast %1 : i32 to index
    %3 = memref.load %arg1[%2] : memref<16xi32, #tpu.memory_space<smem>>
    %4 = arith.index_cast %3 : i32 to index
    %c0 = arith.constant 0 : index
    %5 = vector.load %arg2[%4, %c0] : memref<64x32xf32, #tpu.memory_space<vmem>>, vector<1x32xf32>
    %6 = arith.index_cast %c0_i32 : i32 to index
    %c0_0 = arith.constant 0 : index
    %7 = vector.load %arg3[%6, %c0_0] : memref<8x32xf32, #tpu.memory_space<vmem>>, vector<1x32xf32>
    tpu.vector_store %arg3[%6, %c0_0], %5 {strides = array<i32>} : memref<8x32xf32, #tpu.memory_space<vmem>>, vector<1x32xf32>,
    %c1_i32 = arith.constant 1 : i32
    %8 = arith.addi %0, %c1_i32 : i32
    %9 = arith.index_cast %8 : i32 to index
    %10 = memref.load %arg1[%9] : memref<16xi32, #tpu.memory_space<smem>>
    %11 = arith.index_cast %10 : i32 to index
    %c0_1 = arith.constant 0 : index
    %12 = vector.load %arg2[%11, %c0_1] : memref<64x32xf32, #tpu.memory_space<vmem>>, vector<1x32xf32>
    %13 = arith.index_cast %c1_i32 : i32 to index
    %c0_2 = arith.constant 0 : index
    %14 = vector.load %arg3[%13, %c0_2] : memref<8x32xf32, #tpu.memory_space<vmem>>, vector<1x32xf32>
    tpu.vector_store %arg3[%13, %c0_2], %12 {strides = array<i32>} : memref<8x32xf32, #tpu.memory_space<vmem>>, vector<1x32xf32>,
    %c2_i32 = arith.constant 2 : i32
    %15 = arith.addi %0, %c2_i32 : i32
    %16 = arith.index_cast %15 : i32 to index
    %17 = memref.load %arg1[%16] : memref<16xi32, #tpu.memory_space<smem>>
    %18 = arith.index_cast %17 : i32 to index
    %c0_3 = arith.constant 0 : index
    %19 = vector.load %arg2[%18, %c0_3] : memref<64x32xf32, #tpu.memory_space<vmem>>, vector<1x32xf32>
    %20 = arith.index_cast %c2_i32 : i32 to index
    %c0_4 = arith.constant 0 : index
    %21 = vector.load %arg3[%20, %c0_4] : memref<8x32xf32, #tpu.memory_space<vmem>>, vector<1x32xf32>
    tpu.vector_store %arg3[%20, %c0_4], %19 {strides = array<i32>} : memref<8x32xf32, #tpu.memory_space<vmem>>, vector<1x32xf32>,
    %c3_i32 = arith.constant 3 : i32
    %22 = arith.addi %0, %c3_i32 : i32
    %23 = arith.index_cast %22 : i32 to index
    %24 = memref.load %arg1[%23] : memref<16xi32, #tpu.memory_space<smem>>
    %25 = arith.index_cast %24 : i32 to index
    %c0_5 = arith.constant 0 : index
    %26 = vector.load %arg2[%25, %c0_5] : memref<64x32xf32, #tpu.memory_space<vmem>>, vector<1x32xf32>
    %27 = arith.index_cast %c3_i32 : i32 to index
    %c0_6 = arith.constant 0 : index
    %28 = vector.load %arg3[%27, %c0_6] : memref<8x32xf32, #tpu.memory_space<vmem>>, vector<1x32xf32>
    tpu.vector_store %arg3[%27, %c0_6], %26 {strides = array<i32>} : memref<8x32xf32, #tpu.memory_space<vmem>>, vector<1x32xf32>,
    %c4_i32 = arith.constant 4 : i32
    %29 = arith.addi %0, %c4_i32 : i32
    %30 = arith.index_cast %29 : i32 to index
    %31 = memref.load %arg1[%30] : memref<16xi32, #tpu.memory_space<smem>>
    %32 = arith.index_cast %31 : i32 to index
    %c0_7 = arith.constant 0 : index
    %33 = vector.load %arg2[%32, %c0_7] : memref<64x32xf32, #tpu.memory_space<vmem>>, vector<1x32xf32>
    %34 = arith.index_cast %c4_i32 : i32 to index
    %c0_8 = arith.constant 0 : index
    %35 = vector.load %arg3[%34, %c0_8] : memref<8x32xf32, #tpu.memory_space<vmem>>, vector<1x32xf32>
    tpu.vector_store %arg3[%34, %c0_8], %33 {strides = array<i32>} : memref<8x32xf32, #tpu.memory_space<vmem>>, vector<1x32xf32>,
    %c5_i32 = arith.constant 5 : i32
    %36 = arith.addi %0, %c5_i32 : i32
    %37 = arith.index_cast %36 : i32 to index
    %38 = memref.load %arg1[%37] : memref<16xi32, #tpu.memory_space<smem>>
    %39 = arith.index_cast %38 : i32 to index
    %c0_9 = arith.constant 0 : index
    %40 = vector.load %arg2[%39, %c0_9] : memref<64x32xf32, #tpu.memory_space<vmem>>, vector<1x32xf32>
    %41 = arith.index_cast %c5_i32 : i32 to index
    %c0_10 = arith.constant 0 : index
    %42 = vector.load %arg3[%41, %c0_10] : memref<8x32xf32, #tpu.memory_space<vmem>>, vector<1x32xf32>
    tpu.vector_store %arg3[%41, %c0_10], %40 {strides = array<i32>} : memref<8x32xf32, #tpu.memory_space<vmem>>, vector<1x32xf32>,
    %c6_i32 = arith.constant 6 : i32
    %43 = arith.addi %0, %c6_i32 : i32
    %44 = arith.index_cast %43 : i32 to index
    %45 = memref.load %arg1[%44] : memref<16xi32, #tpu.memory_space<smem>>
    %46 = arith.index_cast %45 : i32 to index
    %c0_11 = arith.constant 0 : index
    %47 = vector.load %arg2[%46, %c0_11] : memref<64x32xf32, #tpu.memory_space<vmem>>, vector<1x32xf32>
    %48 = arith.index_cast %c6_i32 : i32 to index
    %c0_12 = arith.constant 0 : index
    %49 = vector.load %arg3[%48, %c0_12] : memref<8x32xf32, #tpu.memory_space<vmem>>, vector<1x32xf32>
    tpu.vector_store %arg3[%48, %c0_12], %47 {strides = array<i32>} : memref<8x32xf32, #tpu.memory_space<vmem>>, vector<1x32xf32>,
    %c7_i32 = arith.constant 7 : i32
    %50 = arith.addi %0, %c7_i32 : i32
    %51 = arith.index_cast %50 : i32 to index
    %52 = memref.load %arg1[%51] : memref<16xi32, #tpu.memory_space<smem>>
    %53 = arith.index_cast %52 : i32 to index
    %c0_13 = arith.constant 0 : index
    %54 = vector.load %arg2[%53, %c0_13] : memref<64x32xf32, #tpu.memory_space<vmem>>, vector<1x32xf32>
    %55 = arith.index_cast %c7_i32 : i32 to index
    %c0_14 = arith.constant 0 : index
    %56 = vector.load %arg3[%55, %c0_14] : memref<8x32xf32, #tpu.memory_space<vmem>>, vector<1x32xf32>
    tpu.vector_store %arg3[%55, %c0_14], %54 {strides = array<i32>} : memref<8x32xf32, #tpu.memory_space<vmem>>, vector<1x32xf32>,
    %c8_i32_15 = arith.constant 8 : i32
    %c0_16 = arith.constant 0 : index
    %c0_17 = arith.constant 0 : index
    %57 = vector.load %arg3[%c0_16, %c0_17] : memref<8x32xf32, #tpu.memory_space<vmem>>, vector<8x32xf32>
    %cst = arith.constant 5.65685415 : f32
    %58 = vector.broadcast %cst : f32 to vector<8x32xf32>
    %59 = arith.mulf %57, %58 : vector<8x32xf32>
    %c0_18 = arith.constant 0 : index
    %c0_19 = arith.constant 0 : index
    %60 = vector.load %arg3[%c0_18, %c0_19] : memref<8x32xf32, #tpu.memory_space<vmem>>, vector<8x32xf32>
    tpu.vector_store %arg3[%c0_18, %c0_19], %59 {strides = array<i32>} : memref<8x32xf32, #tpu.memory_space<vmem>>, vector<8x32xf32>,
    return
  }
  func.func @transform_0(%arg0: i32, %arg1: memref<16xi32, #tpu.memory_space<smem>>) -> (i32, i32) {
    %c0_i32 = arith.constant 0 : i32
    %c0_i32_0 = arith.constant 0 : i32
    %c0_i32_1 = arith.constant 0 : i32
    return %c0_i32, %c0_i32_0 : i32, i32
  }
  func.func @transform_1(%arg0: i32, %arg1: memref<16xi32, #tpu.memory_space<smem>>) -> (i32, i32) {
    %c0_i32 = arith.constant 0 : i32
    %c0_i32_0 = arith.constant 0 : i32
    return %arg0, %c0_i32 : i32, i32
  }
}

</mosaic_0001>

<llo_original>
// kernel: tpu_custom_call.1
$region0: #{tpu_custom_call.1}
  #allocation0 [shape = 'u32[]', space=smem, size = 0x4, offset = 0x4, fixed_abs, tag = 'smem constant byte address 0x4 - core index']
  #allocation1 [shape = 'u32[144,128]{1,0:T(1,128)}', space=vmem, size = 0x12000, scoped, tag = 'internal scratch']
  #allocation2 [shape = 's32[1]{0}', space=sflag, size = 0x4, scoped, tag = 'scoped memory for tpu_custom_call.1']
  #allocation3 [shape = 'u8[512]{0}', space=smem, size = 0x200, scoped, tag = 'prefetched SMEM operand 0']
  %s0 = inlined_call_operand.vmem [shape: s32[16], index: 0, kind: input, shape index: {}]
  %s1 = inlined_call_operand.vmem [shape: f32[64,32], index: 1, kind: input, shape index: {}]
  %s2 = inlined_call_operand.hbm [shape: f32[16,32], index: 2, kind: output, shape index: {}]
  %s3 = sld [smem:[#allocation0]]
  $region37: #{tpu_custom_call.1} parent=0
    _
  %s5 = ssub.s32 1, %s3
  %s6 = scalar_select 0, %s5, %s3
  %s7 = sshll.u32 %s0, 4
  %s8 = int_to_ptr.vmem [resolvable:$true] %s7
  %10 = dma.vmem_to_smem %s8, 16, [#allocation3], [#allocation2]
  %11 = dma.done [#allocation2], 16
  %12 = sfence
  $region1: #{tpu_custom_call.1} parent=0
    #allocation4 [shape = 'u8[8192]{0}', space=vmem, size = 0x2000, scoped, tag = 'output window, operand 0']
    #allocation5 [shape = 's32[2]{0}', space=sflag, size = 0x8, scoped, tag = 'scoped memory for tpu_custom_call.1']
    %13 = vsyncpa [#allocation5], 0
    %s14 = scalar_lea.sflag [#allocation5], 1
    %15 = vsyncpa %s14, 0
    loop: start=0, step=1, limit=4
    $region2: #{tpu_custom_call.1} parent=1 // loop_pre_header
      _
    $region3: #{tpu_custom_call.1} parent=1 // loop_header
      %s17 = sphi 0, %s21
      %p18 = scmp.ge.s32.totalorder %s17, 4
      %s25 = sphi 0, %s25
      %s27 = sphi 0, %s25
      %s28 = sphi 0, %s27
      %s42 = sphi 0, %s28
      %s48 = sphi 0, %s50
      %s51 = sphi 0, %s48
      %s52 = sphi 0, %s51
      %s68 = sphi 0, %s52
    $region4: #{tpu_custom_call.1} parent=1 // loop_header_branch
      %20 = sbr.rel (%p18) target = $region8
    $region5: #{tpu_custom_call.1} parent=1 // loop_body
      %s22 = ssub.s32 %s17, 1
      %s23 = ssub.s32 %s17, 2
      %s24 = sadd.s32 %s17, 1
      %s26 = sadd.s32 %s25, 1
      %p29 = scmp.eq.s32.totalorder %s17, 1
      %p30 = scmp.ne.s32.totalorder %s25, %s27
      %p31 = scmp.eq.s32.totalorder %s17, 0
      %p32 = por %p30, %p31
      %p33 = scmp.ne.s32.totalorder %s25, %s27
      %p34 = scmp.eq.s32.totalorder %s22, 1
      %p35 = por %p33, %p34
      %p36 = scmp.ne.s32.totalorder %s27, %s28
      %p37 = scmp.eq.s32.totalorder %s22, 0
      %p38 = por %p36, %p37
      %p39 = scmp.ne.s32.totalorder %s27, %s28
      %p40 = scmp.eq.s32.totalorder %s23, 1
      %p41 = por %p39, %p40
      %p43 = scmp.ne.s32.totalorder %s28, %s42
      %p44 = scmp.eq.s32.totalorder %s23, 0
      %p45 = por %p43, %p44
      %s46 = ssub.s32 %s17, %s24
      %p47 = scmp.eq.s32.totalorder %s46, 0
      %s49 = sadd.s32 %s48, 1
      %s50 = scalar_select %p47, %s48, %s49
      %p53 = pneg %p47
      %p54 = scmp.eq.s32.totalorder %s17, 1
      %p55 = por %p53, %p54
      %p56 = scmp.ne.s32.totalorder %s48, %s51
      %p57 = scmp.eq.s32.totalorder %s17, 0
      %p58 = por %p56, %p57
      %p59 = scmp.ne.s32.totalorder %s48, %s51
      %p60 = scmp.eq.s32.totalorder %s22, 1
      %p61 = por %p59, %p60
      %p62 = scmp.ne.s32.totalorder %s51, %s52
      %p63 = scmp.eq.s32.totalorder %s22, 0
      %p64 = por %p62, %p63
      %p65 = scmp.ne.s32.totalorder %s51, %s52
      %p66 = scmp.eq.s32.totalorder %s23, 1
      %p67 = por %p65, %p66
      %p69 = scmp.ne.s32.totalorder %s52, %s68
      %p70 = scmp.eq.s32.totalorder %s23, 0
      %p71 = por %p69, %p70
      %p72 = scmp.le.s32.totalorder 1, %s17
      %p73 = scmp.lt.s32.totalorder %s17, 3
      %p74 = pnand %p72, %p73
      %p75 = pneg %p74
      // Predicated region
      $region9: #{tpu_custom_call.1} parent=5 // pred_check
        _
      $region10: #{tpu_custom_call.1} parent=5 // pred_check_branch
        %77 = sbr.rel (%p74) target = $region12
      $region11: #{tpu_custom_call.1} parent=5 // pred_region
        %s78 = ssub.s32 %s17, 1
        // Predicated region
        $region13: #{tpu_custom_call.1} parent=11 // pred_check
          %p79 = pneg %p38
        $region14: #{tpu_custom_call.1} parent=11 // pred_check_branch
          %81 = sbr.rel (%p79) target = $region16
        $region15: #{tpu_custom_call.1} parent=11 // pred_region
          _
        $region16: #{tpu_custom_call.1} parent=11 // pred_fallthru
          _
      $region12: #{tpu_custom_call.1} parent=5 // pred_fallthru
        _
      %p82 = scmp.lt.s32.totalorder %s17, 2
      // Predicated region
      $region17: #{tpu_custom_call.1} parent=5 // pred_check
        %p83 = pneg %p82
      $region18: #{tpu_custom_call.1} parent=5 // pred_check_branch
        %85 = sbr.rel (%p83) target = $region20
      $region19: #{tpu_custom_call.1} parent=5 // pred_region
        _
      $region20: #{tpu_custom_call.1} parent=5 // pred_fallthru
        _
      %p86 = scmp.le.s32.totalorder 1, %s17
      %p87 = scmp.lt.s32.totalorder %s17, 3
      %p88 = pnand %p86, %p87
      %p89 = pneg %p88
      // Predicated region
      $region21: #{tpu_custom_call.1} parent=5 // pred_check
        _
      $region22: #{tpu_custom_call.1} parent=5 // pred_check_branch
        %91 = sbr.rel (%p88) target = $region24
      $region23: #{tpu_custom_call.1} parent=5 // pred_region
        %s92 = ssub.s32 %s17, 1
        %p93 = pneg %p38
        %p94 = pneg %p35
        %p95 = pneg %p64
        %p96 = pneg %p61
        %s97 = sand.u32 %s51, 1
        %s98 = scalar_lea.sflag [#allocation5], %s97
        %s99 = sand.u32 %s51, 1
        %s100 = smul.addr %s99, 8
        %s101 = scalar_lea.vmem [#allocation4], %s100
        %s102 = smul.u32 %s22, 8
        %s103 = sld [smem:[#allocation3 + %s102]]
        %s104 = scalar_lea.vmem %s1, %s103
        %v105 = vld [vmem:[%s104] sm:$0x1]
        %vm106 = vcmask 253952
        %107 = vst.msk [vmem:[%s101] sm:$0x1] %vm106, %v105
        %s108 = sadd.s32 %s102, 1
        %s109 = sld [smem:[#allocation3 + %s108]]
        %s110 = scalar_lea.vmem %s1, %s109
        %v111 = vld [vmem:[%s110] sm:$0x1]
        %112 = vst.msk [vmem:[%s101 + $0x1] sm:$0x1] %vm106, %v111
        %s113 = sadd.s32 %s102, 2
        %s114 = sld [smem:[#allocation3 + %s113]]
        %s115 = scalar_lea.vmem %s1, %s114
        %v116 = vld [vmem:[%s115] sm:$0x1]
        %117 = vst.msk [vmem:[%s101 + $0x2] sm:$0x1] %vm106, %v116
        %s118 = sadd.s32 %s102, 3
        %s119 = sld [smem:[#allocation3 + %s118]]
        %s120 = scalar_lea.vmem %s1, %s119
        %v121 = vld [vmem:[%s120] sm:$0x1]
        %122 = vst.msk [vmem:[%s101 + $0x3] sm:$0x1] %vm106, %v121
        %s123 = sadd.s32 %s102, 4
        %s124 = sld [smem:[#allocation3 + %s123]]
        %s125 = scalar_lea.vmem %s1, %s124
        %v126 = vld [vmem:[%s125] sm:$0x1]
        %127 = vst.msk [vmem:[%s101 + $0x4] sm:$0x1] %vm106, %v126
        %s128 = sadd.s32 %s102, 5
        %s129 = sld [smem:[#allocation3 + %s128]]
        %s130 = scalar_lea.vmem %s1, %s129
        %v131 = vld [vmem:[%s130] sm:$0x1]
        %132 = vst.msk [vmem:[%s101 + $0x5] sm:$0x1] %vm106, %v131
        %s133 = sadd.s32 %s102, 6
        %s134 = sld [smem:[#allocation3 + %s133]]
        %s135 = scalar_lea.vmem %s1, %s134
        %v136 = vld [vmem:[%s135] sm:$0x1]
        %137 = vst.msk [vmem:[%s101 + $0x6] sm:$0x1] %vm106, %v136
        %s138 = sadd.s32 %s102, 7
        %s139 = sld [smem:[#allocation3 + %s138]]
        %s140 = scalar_lea.vmem %s1, %s139
        %v141 = vld [vmem:[%s140] sm:$0x1]
        %142 = vst.msk [vmem:[%s101 + $0x7] sm:$0x1] %vm106, %v141
        %v143 = vld [vmem:[%s101] sm:$0xff]
        %v144 = vmul.f32 %v143, 5.656854
        %vm145 = vcmask 261120
        %146 = vst.msk [vmem:[%s101] sm:$0xff] %vm145, %v144
        %s147 = sand.u32 %s51, 1
        %s148 = scalar_lea.sflag [#allocation5], %s147
        %s149 = sand.u32 %s51, 1
        %s150 = smul.addr %s149, 8
        %s151 = scalar_lea.vmem [#allocation4], %s150
        // Predicated region
        $region25: #{tpu_custom_call.1} parent=23 // pred_check
          %p152 = pneg %p61
        $region26: #{tpu_custom_call.1} parent=23 // pred_check_branch
          %154 = sbr.rel (%p152) target = $region28
        $region27: #{tpu_custom_call.1} parent=23 // pred_region
          %s156 = ssub.s32 128, 128
          %157 = vsyncadd %s148, %s156
          %s158 = smul.addr %s22, 128
          %s159 = scalar_lea.hbm %s2, %s158
          %s161 = sshll.u32 %s151, 4
          %s162 = int_to_ptr.vmem [resolvable:$true] %s161
          %164 = dma.vmem_to_hbm [thread:$0]  %s162, 128, %s159, %s148
        $region28: #{tpu_custom_call.1} parent=23 // pred_fallthru
          _
      $region24: #{tpu_custom_call.1} parent=5 // pred_fallthru
        _
      %p165 = scmp.le.s32.totalorder 2, %s17
      // Predicated region
      $region29: #{tpu_custom_call.1} parent=5 // pred_check
        %p166 = pneg %p165
      $region30: #{tpu_custom_call.1} parent=5 // pred_check_branch
        %168 = sbr.rel (%p166) target = $region32
      $region31: #{tpu_custom_call.1} parent=5 // pred_region
        %s169 = ssub.s32 %s17, 2
        // Predicated region
        $region33: #{tpu_custom_call.1} parent=31 // pred_check
          %p170 = pneg %p67
        $region34: #{tpu_custom_call.1} parent=31 // pred_check_branch
          %172 = sbr.rel (%p170) target = $region36
        $region35: #{tpu_custom_call.1} parent=31 // pred_region
          %s173 = sand.u32 %s52, 1
          %s174 = scalar_lea.sflag [#allocation5], %s173
          %s175 = sand.u32 %s52, 1
          %s176 = smul.addr %s175, 8
          %s177 = scalar_lea.vmem [#allocation4], %s176
          %178 = dma.done %s174, 128
        $region36: #{tpu_custom_call.1} parent=31 // pred_fallthru
          _
      $region32: #{tpu_custom_call.1} parent=5 // pred_fallthru
        _
    $region6: #{tpu_custom_call.1} parent=1 // loop_footer
      %s21 = sadd.s32 1, %s17
    $region7: #{tpu_custom_call.1} parent=1 // loop_footer_branch
      %16 = sbr.rel target = $region3
    $region8: #{tpu_custom_call.1} parent=1 // loop_exit
      _
    %179 = vsyncpa [#allocation5], 1
    %s180 = scalar_lea.sflag [#allocation5], 1
    %181 = vsyncpa %s180, 1

</llo_original>
